<compile_context>
chip_gen: v6e
topology: v6e:2x2x1
jax: 0.10.0
libtpu: 0.0.40
codegen_flags: <defaults>
</compile_context>

<pallas_src>
import functools

import jax
import jax.numpy as jnp
from jax.experimental import pallas as pl
from jax.experimental.pallas import tpu as pltpu

IGNORE_INDEX = 255


def _speckle_loss_kernel(logit_ref, tgt_ref, bw_ref, bh_ref, loss_ref, *,
                         num_classes, kernel_size, ignore_index, threshold):
    # logit_ref: (1, C, Hp, Wp) float        tgt_ref: (1, Hp, Wp) int32
    # bw_ref:    (Wp, Wp) bf16 band (W/lane) bh_ref:  (Hp, Hp) bf16 band (H/sublane)
    # loss_ref:  (1, 1, 1) f32 per-image masked loss sum
    C = num_classes
    k = kernel_size
    inv = jnp.float32(1.0 / (k * k - 1))
    thr = jnp.float32(threshold)

    Hp, Wp = tgt_ref.shape[1], tgt_ref.shape[2]
    tgt = tgt_ref[0]                                   # (Hp, Wp) int32
    keep = tgt != ignore_index
    keep_f = keep.astype(jnp.float32)

    def logit(c):                                      # vld from VMEM, not a DMA
        return logit_ref[0, c].astype(jnp.float32)

    # Pass 1: per-pixel channel max (stable softmax & argmax reference value).
    m = logit(0)
    for c in range(1, C):
        m = jnp.maximum(m, logit(c))

    # Pass 2: softmax denominator + first-max argmax (matches torch.argmax).
    denom = jnp.zeros((Hp, Wp), jnp.float32)
    pred = jnp.zeros((Hp, Wp), jnp.int32)
    matched = jnp.zeros((Hp, Wp), jnp.bool_)
    for c in range(C):
        x = logit(c)
        denom = denom + jnp.exp(x - m)
        eq = x == m
        take = jnp.logical_and(eq, jnp.logical_not(matched))
        pred = jnp.where(take, jnp.int32(c), pred)
        matched = jnp.logical_or(matched, eq)

    w = keep_f / denom            # hoisted keep * (1/denom) scaling

    # Indicator a[c, y, x] = 1 iff kept pixel whose argmax != c, for all C at once
    # (bf16 is exact for 0/1 values).
    cls = jax.lax.broadcasted_iota(jnp.int32, (C, Hp, Wp), 0)
    a3 = jnp.logical_and(pred[None, :, :] != cls,
                         keep[None, :, :]).astype(jnp.bfloat16)

    # Zero-padded separable k x k box sum.
    # W (lane) pass: one batched MXU matmul over all channels; row sums <= k (exact).
    row = jnp.dot(a3.reshape(C * Hp, Wp), bw_ref[...],
                  preferred_element_type=jnp.float32)
    row3 = row.astype(jnp.bfloat16).reshape(C, Hp, Wp)
    band_h = bh_ref[...]

    # Per-channel: H pass + threshold + softmax-weighted accumulation.
    acc = jnp.zeros((Hp, Wp), jnp.float32)
    for c in range(C):
        box = jnp.dot(band_h, row3[c],
                      preferred_element_type=jnp.float32)   # exact ints <= k^2
        a_c = a3[c].astype(jnp.float32)
        diff = (box - a_c) * inv - a_c                       # == depthwise speckle conv
        diff = jnp.where(diff < thr, 0.0, diff)
        e_c = jnp.exp(logit(c) - m)                          # recomputed (EUP slot)
        acc = acc + e_c * diff

    loss_ref[...] = jnp.broadcast_to(jnp.sum(acc * w), (1, 1, 1))


def _round_up(x, mult):
    return (x + mult - 1) // mult * mult


def _band(n, pad, dtype):
    r = jax.lax.broadcasted_iota(jnp.int32, (n, n), 0)
    s = jax.lax.broadcasted_iota(jnp.int32, (n, n), 1)
    return (jnp.abs(r - s) <= pad).astype(dtype)


def speckle_loss(output, target, *, ignore_index=IGNORE_INDEX, kernel_size=5,
                 scale_factor=0.0001, threshold=None):
    """output: (N, C, H, W) logits; target: (N, H, W) int labels (255 = ignore)."""
    assert kernel_size % 2 == 1
    N, C, H, W = output.shape
    k = kernel_size
    pad = k // 2
    if threshold is None:
        threshold = (k * k - k) * (1.0 / (k * k - 1))

    # Lane-dense repacking: pad W to a multiple of 128 (vreg lane axis) and H to a
    # multiple of 8 (sublane axis).  Padded pixels carry target == ignore_index, so
    # a == 0 and keep == 0 there: box sums at real pixels and the loss are unchanged.
    Hp = _round_up(H, 8)
    Wp = _round_up(W, 128)
    tgt = target.astype(jnp.int32)
    if (Hp, Wp) != (H, W):
        logits = jnp.zeros((N, C, Hp, Wp), output.dtype).at[:, :, :H, :W].set(output)
        tgt = jnp.full((N, Hp, Wp), ignore_index, jnp.int32).at[:, :H, :W].set(tgt)
    else:
        logits = output

    band_w = _band(Wp, pad, jnp.bfloat16)
    band_h = _band(Hp, pad, jnp.bfloat16)

    kernel = functools.partial(_speckle_loss_kernel,
                               num_classes=C, kernel_size=k,
                               ignore_index=ignore_index, threshold=threshold)

    # Scoped-VMEM budget: double-buffered image/target blocks + resident bands +
    # in-kernel temporaries (a3/row3 bf16 + a few (Hp,Wp) f32 maps), 2x headroom,
    # clamped to what every TPU generation can grant (<= 64 MiB = v7x physical).
    itemsize = jnp.dtype(logits.dtype).itemsize
    need = (2 * (C * Hp * Wp * itemsize + Hp * Wp * 4)
            + (Wp * Wp + Hp * Hp) * 2
            + 2 * C * Hp * Wp * 2 + 8 * Hp * Wp * 4)
    vmem_limit = int(min(max(2 * need, 32 * 1024 * 1024), 64 * 1024 * 1024))

    per_image = pl.pallas_call(
        kernel,
        out_shape=jax.ShapeDtypeStruct((N, 1, 1), jnp.float32),
        grid_spec=pltpu.PrefetchScalarGridSpec(
            num_scalar_prefetch=0,
            grid=(N,),
            in_specs=[
                pl.BlockSpec((1, C, Hp, Wp), lambda b: (b, 0, 0, 0)),
                pl.BlockSpec((1, Hp, Wp), lambda b: (b, 0, 0)),
                # Constant block index -> fetched once, stays resident across the grid.
                pl.BlockSpec((Wp, Wp), lambda b: (0, 0)),
                pl.BlockSpec((Hp, Hp), lambda b: (0, 0)),
            ],
            out_specs=pl.BlockSpec((1, 1, 1), lambda b: (b, 0, 0)),
        ),
        compiler_params=pltpu.CompilerParams(
            dimension_semantics=("parallel",),
            vmem_limit_bytes=vmem_limit),
    )(logits, tgt, band_w, band_h)

    return jnp.float32(scale_factor) * jnp.mean(per_image)


def _ref_speckle_loss(output, target, *, ignore_index=IGNORE_INDEX, kernel_size=5,
                      scale_factor=0.0001, threshold=None):
    """Pure-JAX transcription of SpeckleLoss.forward, for verification."""
    N, C, H, W = output.shape
    k = kernel_size
    pad = k // 2
    if threshold is None:
        threshold = (k * k - k) * (1.0 / (k * k - 1))
    inv = jnp.float32(1.0 / (k * k - 1))
    thr = jnp.float32(threshold)

    mask = target != ignore_index                                  # (N, H, W)
    probs = jax.nn.softmax(output.astype(jnp.float32), axis=1)
    pred = jnp.argmax(output, axis=1)                              # == argmax(softmax)
    one_hot = pred[:, None, :, :] == jnp.arange(C, dtype=pred.dtype)[None, :, None, None]
    b = jnp.where(mask[:, None, :, :], one_hot, True)              # ones on ignored px
    a = jnp.logical_not(b).astype(jnp.float32)                     # onz == 2 indicator

    ones_k = jnp.ones((C, 1, k, k), jnp.float32)
    box = jax.lax.conv_general_dilated(
        a, ones_k, window_strides=(1, 1), padding=[(pad, pad), (pad, pad)],
        feature_group_count=C, dimension_numbers=("NCHW", "OIHW", "NCHW"))

    diff = (box - a) * inv - a
    diff = jnp.where(diff < thr, 0.0, diff)
    diff = probs * diff * mask[:, None, :, :]
    loss = diff.sum(axis=(1, 2, 3))
    return jnp.float32(scale_factor) * loss.mean()


if __name__ == "__main__":
    key = jax.random.PRNGKey(0)
    k1, k2, k3 = jax.random.split(key, 3)
    N, C, H, W = 2, 4, 16, 16

    output = jax.random.normal(k1, (N, C, H, W), dtype=jnp.float32)
    target = jax.random.randint(k2, (N, H, W), 0, C, dtype=jnp.int32)
    ignore_mask = jax.random.uniform(k3, (N, H, W)) < 0.1
    target = jnp.where(ignore_mask, IGNORE_INDEX, target)

    loss = speckle_loss(output, target)
    loss = jax.block_until_ready(loss)

    ref = _ref_speckle_loss(output, target)
    assert jnp.allclose(loss, ref, rtol=1e-5, atol=1e-6), (loss, ref)
    print("KERNEL_OK")
</pallas_src>

<mosaic_0001>
module attributes {stable_mosaic.version = 11 : i64} {
  func.func @_speckle_loss_kernel(%arg0: i32, %arg1: memref<1x4x16x128xf32, #tpu.memory_space<vmem>>, %arg2: memref<1x16x128xi32, #tpu.memory_space<vmem>>, %arg3: memref<128x128xbf16, #tpu.memory_space<vmem>>, %arg4: memref<16x16xbf16, #tpu.memory_space<vmem>>, %arg5: memref<1x1x1xf32, #tpu.memory_space<vmem>>) attributes {dimension_semantics = [#tpu.dimension_semantics<parallel>], iteration_bounds = array<i64: 2>, scalar_prefetch = 0 : i64, scratch_operands = 0 : i64, tpu.core_type = #tpu.core_type<tc>, window_params = [{transform_indices = @transform_0, window_bounds = array<i64: 1, 4, 16, 128>}, {transform_indices = @transform_1, window_bounds = array<i64: 1, 16, 128>}, {pipeline_mode = #tpu.pipeline_mode<synchronous>, transform_indices = @transform_2, window_bounds = array<i64: 128, 128>}, {pipeline_mode = #tpu.pipeline_mode<synchronous>, transform_indices = @transform_3, window_bounds = array<i64: 16, 16>}, {transform_indices = @transform_4, window_bounds = array<i64: 1, 1, 1>}]} {
    %c0 = arith.constant 0 : index
    %c0_0 = arith.constant 0 : index
    %c0_1 = arith.constant 0 : index
    %0 = vector.load %arg2[%c0, %c0_0, %c0_1] : memref<1x16x128xi32, #tpu.memory_space<vmem>>, vector<1x16x128xi32>
    %1 = vector.shape_cast %0 : vector<1x16x128xi32> to vector<16x128xi32>
    %c255_i32 = arith.constant 255 : i32
    %2 = vector.broadcast %c255_i32 : i32 to vector<16x128xi32>
    %3 = arith.cmpi ne, %1, %2 : vector<16x128xi32>
    %4 = arith.extui %3 : vector<16x128xi1> to vector<16x128xi32>
    %5 = arith.sitofp %4 : vector<16x128xi32> to vector<16x128xf32>
    %c0_2 = arith.constant 0 : index
    %c0_3 = arith.constant 0 : index
    %c0_4 = arith.constant 0 : index
    %c0_5 = arith.constant 0 : index
    %6 = vector.load %arg1[%c0_2, %c0_3, %c0_4, %c0_5] : memref<1x4x16x128xf32, #tpu.memory_space<vmem>>, vector<1x1x16x128xf32>
    %7 = vector.shape_cast %6 : vector<1x1x16x128xf32> to vector<16x128xf32>
    %c0_6 = arith.constant 0 : index
    %c1 = arith.constant 1 : index
    %c0_7 = arith.constant 0 : index
    %c0_8 = arith.constant 0 : index
    %8 = vector.load %arg1[%c0_6, %c1, %c0_7, %c0_8] : memref<1x4x16x128xf32, #tpu.memory_space<vmem>>, vector<1x1x16x128xf32>
    %9 = vector.shape_cast %8 : vector<1x1x16x128xf32> to vector<16x128xf32>
    %10 = arith.maximumf %7, %9 : vector<16x128xf32>
    %c0_9 = arith.constant 0 : index
    %c2 = arith.constant 2 : index
    %c0_10 = arith.constant 0 : index
    %c0_11 = arith.constant 0 : index
    %11 = vector.load %arg1[%c0_9, %c2, %c0_10, %c0_11] : memref<1x4x16x128xf32, #tpu.memory_space<vmem>>, vector<1x1x16x128xf32>
    %12 = vector.shape_cast %11 : vector<1x1x16x128xf32> to vector<16x128xf32>
    %13 = arith.maximumf %10, %12 : vector<16x128xf32>
    %c0_12 = arith.constant 0 : index
    %c3 = arith.constant 3 : index
    %c0_13 = arith.constant 0 : index
    %c0_14 = arith.constant 0 : index
    %14 = vector.load %arg1[%c0_12, %c3, %c0_13, %c0_14] : memref<1x4x16x128xf32, #tpu.memory_space<vmem>>, vector<1x1x16x128xf32>
    %15 = vector.shape_cast %14 : vector<1x1x16x128xf32> to vector<16x128xf32>
    %16 = arith.maximumf %13, %15 : vector<16x128xf32>
    %cst = arith.constant 0.000000e+00 : f32
    %17 = vector.broadcast %cst : f32 to vector<16x128xf32>
    %c0_i32 = arith.constant 0 : i32
    %18 = vector.broadcast %c0_i32 : i32 to vector<16x128xi32>
    %false = arith.constant false
    %19 = vector.broadcast %false : i1 to vector<16x128xi1>
    %c0_15 = arith.constant 0 : index
    %c0_16 = arith.constant 0 : index
    %c0_17 = arith.constant 0 : index
    %c0_18 = arith.constant 0 : index
    %20 = vector.load %arg1[%c0_15, %c0_16, %c0_17, %c0_18] : memref<1x4x16x128xf32, #tpu.memory_space<vmem>>, vector<1x1x16x128xf32>
    %21 = vector.shape_cast %20 : vector<1x1x16x128xf32> to vector<16x128xf32>
    %22 = arith.subf %21, %16 : vector<16x128xf32>
    %23 = math.exp %22 : vector<16x128xf32>
    %24 = arith.addf %17, %23 : vector<16x128xf32>
    %25 = arith.cmpf oeq, %21, %16 : vector<16x128xf32>
    %cst_19 = arith.constant dense<true> : vector<16x128xi1>
    %26 = arith.xori %19, %cst_19 : vector<16x128xi1>
    %27 = arith.andi %25, %26 : vector<16x128xi1>
    %c0_i32_20 = arith.constant 0 : i32
    %28 = vector.broadcast %c0_i32_20 : i32 to vector<16x128xi32>
    %29 = arith.select %27, %28, %18 : vector<16x128xi1>, vector<16x128xi32>
    %30 = arith.ori %19, %25 : vector<16x128xi1>
    %c0_21 = arith.constant 0 : index
    %c1_22 = arith.constant 1 : index
    %c0_23 = arith.constant 0 : index
    %c0_24 = arith.constant 0 : index
    %31 = vector.load %arg1[%c0_21, %c1_22, %c0_23, %c0_24] : memref<1x4x16x128xf32, #tpu.memory_space<vmem>>, vector<1x1x16x128xf32>
    %32 = vector.shape_cast %31 : vector<1x1x16x128xf32> to vector<16x128xf32>
    %33 = arith.subf %32, %16 : vector<16x128xf32>
    %34 = math.exp %33 : vector<16x128xf32>
    %35 = arith.addf %24, %34 : vector<16x128xf32>
    %36 = arith.cmpf oeq, %32, %16 : vector<16x128xf32>
    %cst_25 = arith.constant dense<true> : vector<16x128xi1>
    %37 = arith.xori %30, %cst_25 : vector<16x128xi1>
    %38 = arith.andi %36, %37 : vector<16x128xi1>
    %c1_i32 = arith.constant 1 : i32
    %39 = vector.broadcast %c1_i32 : i32 to vector<16x128xi32>
    %40 = arith.select %38, %39, %29 : vector<16x128xi1>, vector<16x128xi32>
    %41 = arith.ori %30, %36 : vector<16x128xi1>
    %c0_26 = arith.constant 0 : index
    %c2_27 = arith.constant 2 : index
    %c0_28 = arith.constant 0 : index
    %c0_29 = arith.constant 0 : index
    %42 = vector.load %arg1[%c0_26, %c2_27, %c0_28, %c0_29] : memref<1x4x16x128xf32, #tpu.memory_space<vmem>>, vector<1x1x16x128xf32>
    %43 = vector.shape_cast %42 : vector<1x1x16x128xf32> to vector<16x128xf32>
    %44 = arith.subf %43, %16 : vector<16x128xf32>
    %45 = math.exp %44 : vector<16x128xf32>
    %46 = arith.addf %35, %45 : vector<16x128xf32>
    %47 = arith.cmpf oeq, %43, %16 : vector<16x128xf32>
    %cst_30 = arith.constant dense<true> : vector<16x128xi1>
    %48 = arith.xori %41, %cst_30 : vector<16x128xi1>
    %49 = arith.andi %47, %48 : vector<16x128xi1>
    %c2_i32 = arith.constant 2 : i32
    %50 = vector.broadcast %c2_i32 : i32 to vector<16x128xi32>
    %51 = arith.select %49, %50, %40 : vector<16x128xi1>, vector<16x128xi32>
    %52 = arith.ori %41, %47 : vector<16x128xi1>
    %c0_31 = arith.constant 0 : index
    %c3_32 = arith.constant 3 : index
    %c0_33 = arith.constant 0 : index
    %c0_34 = arith.constant 0 : index
    %53 = vector.load %arg1[%c0_31, %c3_32, %c0_33, %c0_34] : memref<1x4x16x128xf32, #tpu.memory_space<vmem>>, vector<1x1x16x128xf32>
    %54 = vector.shape_cast %53 : vector<1x1x16x128xf32> to vector<16x128xf32>
    %55 = arith.subf %54, %16 : vector<16x128xf32>
    %56 = math.exp %55 : vector<16x128xf32>
    %57 = arith.addf %46, %56 : vector<16x128xf32>
    %58 = arith.cmpf oeq, %54, %16 : vector<16x128xf32>
    %cst_35 = arith.constant dense<true> : vector<16x128xi1>
    %59 = arith.xori %52, %cst_35 : vector<16x128xi1>
    %60 = arith.andi %58, %59 : vector<16x128xi1>
    %c3_i32 = arith.constant 3 : i32
    %61 = vector.broadcast %c3_i32 : i32 to vector<16x128xi32>
    %62 = arith.select %60, %61, %51 : vector<16x128xi1>, vector<16x128xi32>
    %63 = arith.divf %5, %57 : vector<16x128xf32>
    %64 = tpu.iota {dimensions = array<i32: 0>} : vector<4x16x128xi32>
    %65 = vector.shape_cast %62 : vector<16x128xi32> to vector<1x16x128xi32>
    %66 = vector.broadcast %65 : vector<1x16x128xi32> to vector<4x16x128xi32>
    %67 = arith.cmpi ne, %66, %64 : vector<4x16x128xi32>
    %68 = vector.shape_cast %3 : vector<16x128xi1> to vector<1x16x128xi1>
    %69 = vector.broadcast %68 : vector<1x16x128xi1> to vector<4x16x128xi1>
    %70 = arith.andi %67, %69 : vector<4x16x128xi1>
    %71 = arith.extui %70 : vector<4x16x128xi1> to vector<4x16x128xi32>
    %72 = arith.sitofp %71 : vector<4x16x128xi32> to vector<4x16x128xf32>
    %73 = arith.truncf %72 : vector<4x16x128xf32> to vector<4x16x128xbf16>
    %74 = vector.shape_cast %73 : vector<4x16x128xbf16> to vector<64x128xbf16>
    %c0_36 = arith.constant 0 : index
    %c0_37 = arith.constant 0 : index
    %75 = vector.load %arg3[%c0_36, %c0_37] : memref<128x128xbf16, #tpu.memory_space<vmem>>, vector<128x128xbf16>
    %cst_38 = arith.constant dense<0.000000e+00> : vector<64x128xf32>
    %76 = tpu.matmul %74, %75, %cst_38 {dimension_numbers = #tpu.dot_dimension_numbers<[1], [0], [0], [1], [0, 0, 1, 1], [], []>} : vector<64x128xbf16>, vector<128x128xbf16>, vector<64x128xf32> -> vector<64x128xf32>
    %77 = arith.truncf %76 : vector<64x128xf32> to vector<64x128xbf16>
    %78 = vector.shape_cast %77 : vector<64x128xbf16> to vector<4x16x128xbf16>
    %c0_39 = arith.constant 0 : index
    %c0_40 = arith.constant 0 : index
    %79 = vector.load %arg4[%c0_39, %c0_40] : memref<16x16xbf16, #tpu.memory_space<vmem>>, vector<16x16xbf16>
    %cst_41 = arith.constant 0.000000e+00 : f32
    %80 = vector.broadcast %cst_41 : f32 to vector<16x128xf32>
    %81 = vector.extract_strided_slice %78 {offsets = [0, 0, 0], sizes = [1, 16, 128], strides = [1, 1, 1]} : vector<4x16x128xbf16> to vector<1x16x128xbf16>
    %82 = vector.shape_cast %81 : vector<1x16x128xbf16> to vector<16x128xbf16>
    %cst_42 = arith.constant dense<0.000000e+00> : vector<16x128xf32>
    %83 = tpu.matmul %79, %82, %cst_42 {dimension_numbers = #tpu.dot_dimension_numbers<[1], [0], [0], [1], [0, 0, 1, 1], [], []>} : vector<16x16xbf16>, vector<16x128xbf16>, vector<16x128xf32> -> vector<16x128xf32>
    %84 = vector.extract_strided_slice %73 {offsets = [0, 0, 0], sizes = [1, 16, 128], strides = [1, 1, 1]} : vector<4x16x128xbf16> to vector<1x16x128xbf16>
    %85 = vector.shape_cast %84 : vector<1x16x128xbf16> to vector<16x128xbf16>
    %86 = arith.extf %85 : vector<16x128xbf16> to vector<16x128xf32>
    %87 = arith.subf %83, %86 : vector<16x128xf32>
    %cst_43 = arith.constant 0.0416666679 : f32
    %88 = vector.broadcast %cst_43 : f32 to vector<16x128xf32>
    %89 = arith.mulf %87, %88 : vector<16x128xf32>
    %90 = arith.subf %89, %86 : vector<16x128xf32>
    %cst_44 = arith.constant 0.833333313 : f32
    %91 = vector.broadcast %cst_44 : f32 to vector<16x128xf32>
    %92 = arith.cmpf olt, %90, %91 : vector<16x128xf32>
    %cst_45 = arith.constant 0.000000e+00 : f32
    %93 = vector.broadcast %cst_45 : f32 to vector<16x128xf32>
    %94 = arith.select %92, %93, %90 : vector<16x128xi1>, vector<16x128xf32>
    %c0_46 = arith.constant 0 : index
    %c0_47 = arith.constant 0 : index
    %c0_48 = arith.constant 0 : index
    %c0_49 = arith.constant 0 : index
    %95 = vector.load %arg1[%c0_46, %c0_47, %c0_48, %c0_49] : memref<1x4x16x128xf32, #tpu.memory_space<vmem>>, vector<1x1x16x128xf32>
    %96 = vector.shape_cast %95 : vector<1x1x16x128xf32> to vector<16x128xf32>
    %97 = arith.subf %96, %16 : vector<16x128xf32>
    %98 = math.exp %97 : vector<16x128xf32>
    %99 = arith.mulf %98, %94 : vector<16x128xf32>
    %100 = arith.addf %80, %99 : vector<16x128xf32>
    %101 = vector.extract_strided_slice %78 {offsets = [1, 0, 0], sizes = [1, 16, 128], strides = [1, 1, 1]} : vector<4x16x128xbf16> to vector<1x16x128xbf16>
    %102 = vector.shape_cast %101 : vector<1x16x128xbf16> to vector<16x128xbf16>
    %cst_50 = arith.constant dense<0.000000e+00> : vector<16x128xf32>
    %103 = tpu.matmul %79, %102, %cst_50 {dimension_numbers = #tpu.dot_dimension_numbers<[1], [0], [0], [1], [0, 0, 1, 1], [], []>} : vector<16x16xbf16>, vector<16x128xbf16>, vector<16x128xf32> -> vector<16x128xf32>
    %104 = vector.extract_strided_slice %73 {offsets = [1, 0, 0], sizes = [1, 16, 128], strides = [1, 1, 1]} : vector<4x16x128xbf16> to vector<1x16x128xbf16>
    %105 = vector.shape_cast %104 : vector<1x16x128xbf16> to vector<16x128xbf16>
    %106 = arith.extf %105 : vector<16x128xbf16> to vector<16x128xf32>
    %107 = arith.subf %103, %106 : vector<16x128xf32>
    %cst_51 = arith.constant 0.0416666679 : f32
    %108 = vector.broadcast %cst_51 : f32 to vector<16x128xf32>
    %109 = arith.mulf %107, %108 : vector<16x128xf32>
    %110 = arith.subf %109, %106 : vector<16x128xf32>
    %cst_52 = arith.constant 0.833333313 : f32
    %111 = vector.broadcast %cst_52 : f32 to vector<16x128xf32>
    %112 = arith.cmpf olt, %110, %111 : vector<16x128xf32>
    %cst_53 = arith.constant 0.000000e+00 : f32
    %113 = vector.broadcast %cst_53 : f32 to vector<16x128xf32>
    %114 = arith.select %112, %113, %110 : vector<16x128xi1>, vector<16x128xf32>
    %c0_54 = arith.constant 0 : index
    %c1_55 = arith.constant 1 : index
    %c0_56 = arith.constant 0 : index
    %c0_57 = arith.constant 0 : index
    %115 = vector.load %arg1[%c0_54, %c1_55, %c0_56, %c0_57] : memref<1x4x16x128xf32, #tpu.memory_space<vmem>>, vector<1x1x16x128xf32>
    %116 = vector.shape_cast %115 : vector<1x1x16x128xf32> to vector<16x128xf32>
    %117 = arith.subf %116, %16 : vector<16x128xf32>
    %118 = math.exp %117 : vector<16x128xf32>
    %119 = arith.mulf %118, %114 : vector<16x128xf32>
    %120 = arith.addf %100, %119 : vector<16x128xf32>
    %121 = vector.extract_strided_slice %78 {offsets = [2, 0, 0], sizes = [1, 16, 128], strides = [1, 1, 1]} : vector<4x16x128xbf16> to vector<1x16x128xbf16>
    %122 = vector.shape_cast %121 : vector<1x16x128xbf16> to vector<16x128xbf16>
    %cst_58 = arith.constant dense<0.000000e+00> : vector<16x128xf32>
    %123 = tpu.matmul %79, %122, %cst_58 {dimension_numbers = #tpu.dot_dimension_numbers<[1], [0], [0], [1], [0, 0, 1, 1], [], []>} : vector<16x16xbf16>, vector<16x128xbf16>, vector<16x128xf32> -> vector<16x128xf32>
    %124 = vector.extract_strided_slice %73 {offsets = [2, 0, 0], sizes = [1, 16, 128], strides = [1, 1, 1]} : vector<4x16x128xbf16> to vector<1x16x128xbf16>
    %125 = vector.shape_cast %124 : vector<1x16x128xbf16> to vector<16x128xbf16>
    %126 = arith.extf %125 : vector<16x128xbf16> to vector<16x128xf32>
    %127 = arith.subf %123, %126 : vector<16x128xf32>
    %cst_59 = arith.constant 0.0416666679 : f32
    %128 = vector.broadcast %cst_59 : f32 to vector<16x128xf32>
    %129 = arith.mulf %127, %128 : vector<16x128xf32>
    %130 = arith.subf %129, %126 : vector<16x128xf32>
    %cst_60 = arith.constant 0.833333313 : f32
    %131 = vector.broadcast %cst_60 : f32 to vector<16x128xf32>
    %132 = arith.cmpf olt, %130, %131 : vector<16x128xf32>
    %cst_61 = arith.constant 0.000000e+00 : f32
    %133 = vector.broadcast %cst_61 : f32 to vector<16x128xf32>
    %134 = arith.select %132, %133, %130 : vector<16x128xi1>, vector<16x128xf32>
    %c0_62 = arith.constant 0 : index
    %c2_63 = arith.constant 2 : index
    %c0_64 = arith.constant 0 : index
    %c0_65 = arith.constant 0 : index
    %135 = vector.load %arg1[%c0_62, %c2_63, %c0_64, %c0_65] : memref<1x4x16x128xf32, #tpu.memory_space<vmem>>, vector<1x1x16x128xf32>
    %136 = vector.shape_cast %135 : vector<1x1x16x128xf32> to vector<16x128xf32>
    %137 = arith.subf %136, %16 : vector<16x128xf32>
    %138 = math.exp %137 : vector<16x128xf32>
    %139 = arith.mulf %138, %134 : vector<16x128xf32>
    %140 = arith.addf %120, %139 : vector<16x128xf32>
    %141 = vector.extract_strided_slice %78 {offsets = [3, 0, 0], sizes = [1, 16, 128], strides = [1, 1, 1]} : vector<4x16x128xbf16> to vector<1x16x128xbf16>
    %142 = vector.shape_cast %141 : vector<1x16x128xbf16> to vector<16x128xbf16>
    %cst_66 = arith.constant dense<0.000000e+00> : vector<16x128xf32>
    %143 = tpu.matmul %79, %142, %cst_66 {dimension_numbers = #tpu.dot_dimension_numbers<[1], [0], [0], [1], [0, 0, 1, 1], [], []>} : vector<16x16xbf16>, vector<16x128xbf16>, vector<16x128xf32> -> vector<16x128xf32>
    %144 = vector.extract_strided_slice %73 {offsets = [3, 0, 0], sizes = [1, 16, 128], strides = [1, 1, 1]} : vector<4x16x128xbf16> to vector<1x16x128xbf16>
    %145 = vector.shape_cast %144 : vector<1x16x128xbf16> to vector<16x128xbf16>
    %146 = arith.extf %145 : vector<16x128xbf16> to vector<16x128xf32>
    %147 = arith.subf %143, %146 : vector<16x128xf32>
    %cst_67 = arith.constant 0.0416666679 : f32
    %148 = vector.broadcast %cst_67 : f32 to vector<16x128xf32>
    %149 = arith.mulf %147, %148 : vector<16x128xf32>
    %150 = arith.subf %149, %146 : vector<16x128xf32>
    %cst_68 = arith.constant 0.833333313 : f32
    %151 = vector.broadcast %cst_68 : f32 to vector<16x128xf32>
    %152 = arith.cmpf olt, %150, %151 : vector<16x128xf32>
    %cst_69 = arith.constant 0.000000e+00 : f32
    %153 = vector.broadcast %cst_69 : f32 to vector<16x128xf32>
    %154 = arith.select %152, %153, %150 : vector<16x128xi1>, vector<16x128xf32>
    %c0_70 = arith.constant 0 : index
    %c3_71 = arith.constant 3 : index
    %c0_72 = arith.constant 0 : index
    %c0_73 = arith.constant 0 : index
    %155 = vector.load %arg1[%c0_70, %c3_71, %c0_72, %c0_73] : memref<1x4x16x128xf32, #tpu.memory_space<vmem>>, vector<1x1x16x128xf32>
    %156 = vector.shape_cast %155 : vector<1x1x16x128xf32> to vector<16x128xf32>
    %157 = arith.subf %156, %16 : vector<16x128xf32>
    %158 = math.exp %157 : vector<16x128xf32>
    %159 = arith.mulf %158, %154 : vector<16x128xf32>
    %160 = arith.addf %140, %159 : vector<16x128xf32>
    %161 = arith.mulf %160, %63 : vector<16x128xf32>
    %162 = vector.shape_cast %161 : vector<16x128xf32> to vector<1x16x128xf32>
    %cst_74 = arith.constant dense<0.000000e+00> : vector<1xf32>
    %163 = vector.multi_reduction <add>, %162, %cst_74 [1, 2] : vector<1x16x128xf32> to vector<1xf32>
    %164 = vector.shape_cast %163 : vector<1xf32> to vector<1x1x1xf32>
    %165 = vector.extract %164[0, 0, 0] : f32 from vector<1x1x1xf32>
    %166 = vector.broadcast %165 : f32 to vector<1x1x1xf32>
    %c0_75 = arith.constant 0 : index
    %c0_76 = arith.constant 0 : index
    %c0_77 = arith.constant 0 : index
    %167 = vector.load %arg5[%c0_75, %c0_76, %c0_77] : memref<1x1x1xf32, #tpu.memory_space<vmem>>, vector<1x1x1xf32>
    tpu.vector_store %arg5[%c0_75, %c0_76, %c0_77], %166 {strides = array<i32>} : memref<1x1x1xf32, #tpu.memory_space<vmem>>, vector<1x1x1xf32>,
    return
  }
  func.func @transform_0(%arg0: i32) -> (i32, i32, i32, i32) {
    %c0_i32 = arith.constant 0 : i32
    %c0_i32_0 = arith.constant 0 : i32
    %c0_i32_1 = arith.constant 0 : i32
    %c0_i32_2 = arith.constant 0 : i32
    return %arg0, %c0_i32, %c0_i32_0, %c0_i32_1 : i32, i32, i32, i32
  }
  func.func @transform_1(%arg0: i32) -> (i32, i32, i32) {
    %c0_i32 = arith.constant 0 : i32
    %c0_i32_0 = arith.constant 0 : i32
    %c0_i32_1 = arith.constant 0 : i32
    return %arg0, %c0_i32, %c0_i32_0 : i32, i32, i32
  }
  func.func @transform_2(%arg0: i32) -> (i32, i32) {
    %c0_i32 = arith.constant 0 : i32
    %c0_i32_0 = arith.constant 0 : i32
    %c0_i32_1 = arith.constant 0 : i32
    return %c0_i32, %c0_i32_0 : i32, i32
  }
  func.func @transform_3(%arg0: i32) -> (i32, i32) {
    %c0_i32 = arith.constant 0 : i32
    %c0_i32_0 = arith.constant 0 : i32
    %c0_i32_1 = arith.constant 0 : i32
    return %c0_i32, %c0_i32_0 : i32, i32
  }
  func.func @transform_4(%arg0: i32) -> (i32, i32, i32) {
    %c0_i32 = arith.constant 0 : i32
    %c0_i32_0 = arith.constant 0 : i32
    %c0_i32_1 = arith.constant 0 : i32
    return %arg0, %c0_i32, %c0_i32_0 : i32, i32, i32
  }
}

</mosaic_0001>

<llo_original>
// kernel: tpu_custom_call.1
$region0: #{tpu_custom_call.1}
  #allocation0 [shape = 'u32[]', space=smem, size = 0x4, offset = 0x4, fixed_abs, tag = 'smem constant byte address 0x4 - core index']
  #allocation1 [shape = 'u32[144,128]{1,0:T(1,128)}', space=vmem, size = 0x12000, scoped, tag = 'internal scratch']
  %s0 = inlined_call_operand.hbm [shape: f32[2,4,16,128], index: 0, kind: input, shape index: {}]
  %s1 = inlined_call_operand.hbm [shape: s32[2,16,128], index: 1, kind: input, shape index: {}]
  %s2 = inlined_call_operand.hbm [shape: bf16[128,128], index: 2, kind: input, shape index: {}]
  %s3 = inlined_call_operand.hbm [shape: bf16[16,16], index: 3, kind: input, shape index: {}]
  %s4 = inlined_call_operand.vmem [shape: f32[2,1,1], index: 4, kind: output, shape index: {}]
  %s5 = sld [smem:[#allocation0]]
  $region65: #{tpu_custom_call.1} parent=0
    _
  %s7 = ssub.s32 1, %s5
  %s8 = scalar_select 0, %s7, %s5
  $region1: #{tpu_custom_call.1} parent=0
    #allocation2 [shape = 'u8[65536]{0}', space=vmem, size = 0x10000, scoped, tag = 'input window, operand 0']
    #allocation3 [shape = 's32[2]{0}', space=sflag, size = 0x8, scoped, tag = 'scoped memory for tpu_custom_call.1']
    #allocation4 [shape = 'u8[16384]{0}', space=vmem, size = 0x4000, scoped, tag = 'input window, operand 1']
    #allocation5 [shape = 's32[2]{0}', space=sflag, size = 0x8, scoped, tag = 'scoped memory for tpu_custom_call.1']
    #allocation6 [shape = 'u8[32768]{0}', space=vmem, size = 0x8000, scoped, tag = 'input window, operand 2, single buffered']
    #allocation7 [shape = 'u8[4096]{0}', space=vmem, size = 0x1000, scoped, tag = 'input window, operand 3, single buffered']
    #allocation8 [shape = 's32[1]{0}', space=sflag, size = 0x4, scoped, tag = 'scoped memory for tpu_custom_call.1']
    %9 = vsyncpa [#allocation3], 0
    %s10 = scalar_lea.sflag [#allocation3], 1
    %11 = vsyncpa %s10, 0
    %12 = vsyncpa [#allocation5], 0
    %s13 = scalar_lea.sflag [#allocation5], 1
    %14 = vsyncpa %s13, 0
    %15 = vsyncpa [#allocation8], 0
    loop: start=0, step=1, limit=4
    $region2: #{tpu_custom_call.1} parent=1 // loop_pre_header
      _
    $region3: #{tpu_custom_call.1} parent=1 // loop_header
      %s17 = sphi 0, %s21
      %p18 = scmp.ge.s32.totalorder %s17, 4
      %s27 = sphi 0, %s29
      %s30 = sphi 0, %s27
      %s31 = sphi 0, %s30
      %s47 = sphi 0, %s31
      %s53 = sphi 0, %s55
      %s56 = sphi 0, %s53
      %s57 = sphi 0, %s56
      %s73 = sphi 0, %s57
      %s77 = sphi 0, %s77
      %s79 = sphi 0, %s77
      %s80 = sphi 0, %s79
      %s94 = sphi 0, %s80
      %s98 = sphi 0, %s98
      %s100 = sphi 0, %s98
      %s101 = sphi 0, %s100
      %s115 = sphi 0, %s101
      %s121 = sphi 0, %s123
      %s124 = sphi 0, %s121
      %s125 = sphi 0, %s124
      %s141 = sphi 0, %s125
    $region4: #{tpu_custom_call.1} parent=1 // loop_header_branch
      %20 = sbr.rel (%p18) target = $region8
    $region5: #{tpu_custom_call.1} parent=1 // loop_body
      %s22 = ssub.s32 %s17, 1
      %s23 = ssub.s32 %s17, 2
      %s24 = sadd.s32 %s17, 1
      %s25 = ssub.s32 %s17, %s24
      %p26 = scmp.eq.s32.totalorder %s25, 0
      %s28 = sadd.s32 %s27, 1
      %s29 = scalar_select %p26, %s27, %s28
      %p32 = pneg %p26
      %p33 = scmp.eq.s32.totalorder %s17, 1
      %p34 = por %p32, %p33
      %p35 = scmp.ne.s32.totalorder %s27, %s30
      %p36 = scmp.eq.s32.totalorder %s17, 0
      %p37 = por %p35, %p36
      %p38 = scmp.ne.s32.totalorder %s27, %s30
      %p39 = scmp.eq.s32.totalorder %s22, 1
      %p40 = por %p38, %p39
      %p41 = scmp.ne.s32.totalorder %s30, %s31
      %p42 = scmp.eq.s32.totalorder %s22, 0
      %p43 = por %p41, %p42
      %p44 = scmp.ne.s32.totalorder %s30, %s31
      %p45 = scmp.eq.s32.totalorder %s23, 1
      %p46 = por %p44, %p45
      %p48 = scmp.ne.s32.totalorder %s31, %s47
      %p49 = scmp.eq.s32.totalorder %s23, 0
      %p50 = por %p48, %p49
      %s51 = ssub.s32 %s17, %s24
      %p52 = scmp.eq.s32.totalorder %s51, 0
      %s54 = sadd.s32 %s53, 1
      %s55 = scalar_select %p52, %s53, %s54
      %p58 = pneg %p52
      %p59 = scmp.eq.s32.totalorder %s17, 1
      %p60 = por %p58, %p59
      %p61 = scmp.ne.s32.totalorder %s53, %s56
      %p62 = scmp.eq.s32.totalorder %s17, 0
      %p63 = por %p61, %p62
      %p64 = scmp.ne.s32.totalorder %s53, %s56
      %p65 = scmp.eq.s32.totalorder %s22, 1
      %p66 = por %p64, %p65
      %p67 = scmp.ne.s32.totalorder %s56, %s57
      %p68 = scmp.eq.s32.totalorder %s22, 0
      %p69 = por %p67, %p68
      %p70 = scmp.ne.s32.totalorder %s56, %s57
      %p71 = scmp.eq.s32.totalorder %s23, 1
      %p72 = por %p70, %p71
      %p74 = scmp.ne.s32.totalorder %s57, %s73
      %p75 = scmp.eq.s32.totalorder %s23, 0
      %p76 = por %p74, %p75
      %s78 = sadd.s32 %s77, 1
      %p81 = scmp.eq.s32.totalorder %s17, 1
      %p82 = scmp.ne.s32.totalorder %s77, %s79
      %p83 = scmp.eq.s32.totalorder %s17, 0
      %p84 = por %p82, %p83
      %p85 = scmp.ne.s32.totalorder %s77, %s79
      %p86 = scmp.eq.s32.totalorder %s22, 1
      %p87 = por %p85, %p86
      %p88 = scmp.ne.s32.totalorder %s79, %s80
      %p89 = scmp.eq.s32.totalorder %s22, 0
      %p90 = por %p88, %p89
      %p91 = scmp.ne.s32.totalorder %s79, %s80
      %p92 = scmp.eq.s32.totalorder %s23, 1
      %p93 = por %p91, %p92
      %p95 = scmp.ne.s32.totalorder %s80, %s94
      %p96 = scmp.eq.s32.totalorder %s23, 0
      %p97 = por %p95, %p96
      %s99 = sadd.s32 %s98, 1
      %p102 = scmp.eq.s32.totalorder %s17, 1
      %p103 = scmp.ne.s32.totalorder %s98, %s100
      %p104 = scmp.eq.s32.totalorder %s17, 0
      %p105 = por %p103, %p104
      %p106 = scmp.ne.s32.totalorder %s98, %s100
      %p107 = scmp.eq.s32.totalorder %s22, 1
      %p108 = por %p106, %p107
      %p109 = scmp.ne.s32.totalorder %s100, %s101
      %p110 = scmp.eq.s32.totalorder %s22, 0
      %p111 = por %p109, %p110
      %p112 = scmp.ne.s32.totalorder %s100, %s101
      %p113 = scmp.eq.s32.totalorder %s23, 1
      %p114 = por %p112, %p113
      %p116 = scmp.ne.s32.totalorder %s101, %s115
      %p117 = scmp.eq.s32.totalorder %s23, 0
      %p118 = por %p116, %p117
      %s119 = ssub.s32 %s17, %s24
      %p120 = scmp.eq.s32.totalorder %s119, 0
      %s122 = sadd.s32 %s121, 1
      %s123 = scalar_select %p120, %s121, %s122
      %p126 = pneg %p120
      %p127 = scmp.eq.s32.totalorder %s17, 1
      %p128 = por %p126, %p127
      %p129 = scmp.ne.s32.totalorder %s121, %s124
      %p130 = scmp.eq.s32.totalorder %s17, 0
      %p131 = por %p129, %p130
      %p132 = scmp.ne.s32.totalorder %s121, %s124
      %p133 = scmp.eq.s32.totalorder %s22, 1
      %p134 = por %p132, %p133
      %p135 = scmp.ne.s32.totalorder %s124, %s125
      %p136 = scmp.eq.s32.totalorder %s22, 0
      %p137 = por %p135, %p136
      %p138 = scmp.ne.s32.totalorder %s124, %s125
      %p139 = scmp.eq.s32.totalorder %s23, 1
      %p140 = por %p138, %p139
      %p142 = scmp.ne.s32.totalorder %s125, %s141
      %p143 = scmp.eq.s32.totalorder %s23, 0
      %p144 = por %p142, %p143
      %p145 = scmp.le.s32.totalorder 1, %s17
      %p146 = scmp.lt.s32.totalorder %s17, 3
      %p147 = pnand %p145, %p146
      %p148 = pneg %p147
      // Predicated region
      $region9: #{tpu_custom_call.1} parent=5 // pred_check
        _
      $region10: #{tpu_custom_call.1} parent=5 // pred_check_branch
        %150 = sbr.rel (%p147) target = $region12
      $region11: #{tpu_custom_call.1} parent=5 // pred_region
        %s151 = ssub.s32 %s17, 1
        // Predicated region
        $region13: #{tpu_custom_call.1} parent=11 // pred_check
          %p152 = pneg %p90
        $region14: #{tpu_custom_call.1} parent=11 // pred_check_branch
          %154 = sbr.rel (%p152) target = $region16
        $region15: #{tpu_custom_call.1} parent=11 // pred_region
          %s156 = ssub.s32 1024, 1024
          %157 = vsyncadd [#allocation5], %s156
          %s158 = sshll.u32 [#allocation6], 4
          %s159 = int_to_ptr.vmem [resolvable:$true] %s158
          %164 = dma.hbm_to_vmem [thread:$0]  %s2, 1024, %s159, [#allocation5], 64, 64, 4
        $region16: #{tpu_custom_call.1} parent=11 // pred_fallthru
          _
        // Predicated region
        $region17: #{tpu_custom_call.1} parent=11 // pred_check
          %p165 = pneg %p111
        $region18: #{tpu_custom_call.1} parent=11 // pred_check_branch
          %167 = sbr.rel (%p165) target = $region20
        $region19: #{tpu_custom_call.1} parent=11 // pred_region
          %s169 = ssub.s32 128, 128
          %170 = vsyncadd [#allocation8], %s169
          %s171 = sshll.u32 [#allocation7], 4
          %s172 = int_to_ptr.vmem [resolvable:$true] %s171
          %177 = dma.hbm_to_vmem [thread:$0]  %s3, 128, %s172, [#allocation8], 64, 64, 4
        $region20: #{tpu_custom_call.1} parent=11 // pred_fallthru
          _
      $region12: #{tpu_custom_call.1} parent=5 // pred_fallthru
        _
      %p178 = scmp.lt.s32.totalorder %s17, 2
      // Predicated region
      $region21: #{tpu_custom_call.1} parent=5 // pred_check
        %p179 = pneg %p178
      $region22: #{tpu_custom_call.1} parent=5 // pred_check_branch
        %181 = sbr.rel (%p179) target = $region24
      $region23: #{tpu_custom_call.1} parent=5 // pred_region
        // Predicated region
        $region25: #{tpu_custom_call.1} parent=23 // pred_check
          %p182 = pneg %p37
        $region26: #{tpu_custom_call.1} parent=23 // pred_check_branch
          %184 = sbr.rel (%p182) target = $region28
        $region27: #{tpu_custom_call.1} parent=23 // pred_region
          %s185 = sand.u32 %s27, 1
          %s186 = scalar_lea.sflag [#allocation3], %s185
          %s187 = sand.u32 %s27, 1
          %s188 = smul.addr %s187, 64
          %s189 = scalar_lea.vmem [#allocation2], %s188
          %s191 = ssub.s32 1024, 1024
          %192 = vsyncadd %s186, %s191
          %s193 = smul.addr %s17, 8
          %s194 = smul.addr %s193, 128
          %s195 = scalar_lea.hbm %s0, %s194
          %s196 = sshll.u32 %s189, 4
          %s197 = int_to_ptr.vmem [resolvable:$true] %s196
          %202 = dma.hbm_to_vmem [thread:$0]  %s195, 1024, %s197, %s186, 128, 128, 8
        $region28: #{tpu_custom_call.1} parent=23 // pred_fallthru
          _
        // Predicated region
        $region29: #{tpu_custom_call.1} parent=23 // pred_check
          %p203 = pneg %p63
        $region30: #{tpu_custom_call.1} parent=23 // pred_check_branch
          %205 = sbr.rel (%p203) target = $region32
        $region31: #{tpu_custom_call.1} parent=23 // pred_region
          %s206 = sand.u32 %s17, 1
          %s207 = scalar_lea.sflag [#allocation5], %s206
          %s208 = sand.u32 %s53, 1
          %s209 = smul.addr %s208, 16
          %s210 = scalar_lea.vmem [#allocation4], %s209
          %s212 = ssub.s32 256, 256
          %213 = vsyncadd %s207, %s212
          %s214 = smul.addr %s17, 2
          %s215 = smul.addr %s214, 128
          %s216 = scalar_lea.hbm %s1, %s215
          %s217 = sshll.u32 %s210, 4
          %s218 = int_to_ptr.vmem [resolvable:$true] %s217
          %223 = dma.hbm_to_vmem [thread:$0]  %s216, 256, %s218, %s207, 128, 128, 8
        $region32: #{tpu_custom_call.1} parent=23 // pred_fallthru
          _
      $region24: #{tpu_custom_call.1} parent=5 // pred_fallthru
        _
      %p224 = scmp.le.s32.totalorder 1, %s17
      %p225 = scmp.lt.s32.totalorder %s17, 3
      %p226 = pnand %p224, %p225
      %p227 = pneg %p226
      // Predicated region
      $region33: #{tpu_custom_call.1} parent=5 // pred_check
        _
      $region34: #{tpu_custom_call.1} parent=5 // pred_check_branch
        %229 = sbr.rel (%p226) target = $region36
      $region35: #{tpu_custom_call.1} parent=5 // pred_region
        %s230 = ssub.s32 %s17, 1
        %s231 = sand.u32 %s30, 1
        %s232 = scalar_lea.sflag [#allocation3], %s231
        %s233 = sand.u32 %s30, 1
        %s234 = smul.addr %s233, 64
        %s235 = scalar_lea.vmem [#allocation2], %s234
        // Predicated region
        $region37: #{tpu_custom_call.1} parent=35 // pred_check
          %p236 = pneg %p43
        $region38: #{tpu_custom_call.1} parent=35 // pred_check_branch
          %238 = sbr.rel (%p236) target = $region40
        $region39: #{tpu_custom_call.1} parent=35 // pred_region
          %239 = dma.done %s232, 1024
        $region40: #{tpu_custom_call.1} parent=35 // pred_fallthru
          _
        %s240 = sand.u32 %s22, 1
        %s241 = scalar_lea.sflag [#allocation5], %s240
        %s242 = sand.u32 %s56, 1
        %s243 = smul.addr %s242, 16
        %s244 = scalar_lea.vmem [#allocation4], %s243
        // Predicated region
        $region41: #{tpu_custom_call.1} parent=35 // pred_check
          %p245 = pneg %p69
        $region42: #{tpu_custom_call.1} parent=35 // pred_check_branch
          %247 = sbr.rel (%p245) target = $region44
        $region43: #{tpu_custom_call.1} parent=35 // pred_region
          %248 = dma.done %s241, 256
        $region44: #{tpu_custom_call.1} parent=35 // pred_fallthru
          _
        // Predicated region
        $region45: #{tpu_custom_call.1} parent=35 // pred_check
          %p249 = pneg %p90
        $region46: #{tpu_custom_call.1} parent=35 // pred_check_branch
          %251 = sbr.rel (%p249) target = $region48
        $region47: #{tpu_custom_call.1} parent=35 // pred_region
          %252 = dma.done [#allocation5], 1024
        $region48: #{tpu_custom_call.1} parent=35 // pred_fallthru
          _
        // Predicated region
        $region49: #{tpu_custom_call.1} parent=35 // pred_check
          %p253 = pneg %p111
        $region50: #{tpu_custom_call.1} parent=35 // pred_check_branch
          %255 = sbr.rel (%p253) target = $region52
        $region51: #{tpu_custom_call.1} parent=35 // pred_region
          %256 = dma.done [#allocation8], 128
        $region52: #{tpu_custom_call.1} parent=35 // pred_fallthru
          _
        %s257 = sand.u32 %s30, 1
        %s258 = scalar_lea.sflag [#allocation3], %s257
        %s259 = sand.u32 %s30, 1
        %s260 = smul.addr %s259, 64
        %s261 = scalar_lea.vmem [#allocation2], %s260
        %p262 = pneg %p43
        %p263 = pneg %p40
        %s264 = sand.u32 %s22, 1
        %s265 = scalar_lea.sflag [#allocation5], %s264
        %s266 = sand.u32 %s56, 1
        %s267 = smul.addr %s266, 16
        %s268 = scalar_lea.vmem [#allocation4], %s267
        %p269 = pneg %p69
        %p270 = pneg %p66
        %p271 = pneg %p90
        %p272 = pneg %p87
        %p273 = pneg %p111
        %p274 = pneg %p108
        %p275 = pneg %p137
        %p276 = pneg %p134
        %p277 = scmp.lt.s32.totalorder %s22, 1
        %s278 = scalar_select %p277, %s22, 1
        %s279 = scalar_lea.vmem %s4, %s278
        %p280 = scmp.lt.s32.totalorder %s22, 1
        %s281 = scalar_select %p280, %s22, 1
        %s282 = scalar_lea.vmem %s4, %s281
        %v284 = vld [vmem:[%s244] sm:$0xff]
        %v285 = vld [vmem:[%s244 + $0x8] sm:$0xff]
        %vm286 = vcmp.ne.s32.totalorder %v284, 255
        %vm287 = vcmp.ne.s32.totalorder %v285, 255
        %v288 = vsel %vm286, 1, 0
        %v289 = vsel %vm287, 1, 0
        %v290 = vcvt.s32.f32 %v288
        %v291 = vcvt.s32.f32 %v289
        %v292 = vld [vmem:[%s235] sm:$0xff]
        %v293 = vld [vmem:[%s235 + $0x8] sm:$0xff]
        %s294 = scalar_lea.vmem %s235, 16 [#allocation2]
        %v295 = vld [vmem:[%s294] sm:$0xff]
        %v296 = vld [vmem:[%s294 + $0x8] sm:$0xff]
        %v297 = vmax.f32 %v292, %v295
        %v298 = vmax.f32 %v293, %v296
        %s299 = scalar_lea.vmem %s235, 32 [#allocation2]
        %v300 = vld [vmem:[%s299] sm:$0xff]
        %v301 = vld [vmem:[%s299 + $0x8] sm:$0xff]
        %v302 = vmax.f32 %v297, %v300
        %v303 = vmax.f32 %v298, %v301
        %s304 = scalar_lea.vmem %s235, 48 [#allocation2]
        %v305 = vld [vmem:[%s304] sm:$0xff]
        %v306 = vld [vmem:[%s304 + $0x8] sm:$0xff]
        %v307 = vmax.f32 %v302, %v305
        %v308 = vmax.f32 %v303, %v306
        %v309 = vsub.f32 %v292, %v307
        %v310 = vsub.f32 %v293, %v308
        %v311 = vmul.f32 %v309, 1.442695
        %v312 = vpow.pop %v311
        %v313 = vmul.f32 %v310, 1.442695
        %v314 = vpow.pop %v313
        %v315 = vadd.f32 %v312, 0.0
        %v316 = vadd.f32 %v314, 0.0
        %vm317 = vcmp.eq.f32.partialorder %v292, %v307
        %vm318 = vcmp.eq.f32.partialorder %v293, %v308
        %v319 = vsub.f32 %v295, %v307
        %v320 = vsub.f32 %v296, %v308
        %v321 = vmul.f32 %v319, 1.442695
        %v322 = vpow.pop %v321
        %v323 = vmul.f32 %v320, 1.442695
        %v324 = vpow.pop %v323
        %v325 = vadd.f32 %v315, %v322
        %v326 = vadd.f32 %v316, %v324
        %vm327 = vcmp.eq.f32.partialorder %v295, %v307
        %vm328 = vcmp.eq.f32.partialorder %v296, %v308
        %vm329 = vmxor %vm317, 1
        %vm330 = vmxor %vm318, 1
        %vm331 = vmand %vm327, %vm329
        %vm332 = vmand %vm328, %vm330
        %v333 = vsel %vm331, 1, 0
        %v334 = vsel %vm332, 1, 0
        %vm335 = vmor %vm317, %vm327
        %vm336 = vmor %vm318, %vm328
        %v337 = vsub.f32 %v300, %v307
        %v338 = vsub.f32 %v301, %v308
        %v339 = vmul.f32 %v337, 1.442695
        %v340 = vpow.pop %v339
        %v341 = vmul.f32 %v338, 1.442695
        %v342 = vpow.pop %v341
        %v343 = vadd.f32 %v325, %v340
        %v344 = vadd.f32 %v326, %v342
        %vm345 = vcmp.eq.f32.partialorder %v300, %v307
        %vm346 = vcmp.eq.f32.partialorder %v301, %v308
        %vm347 = vmxor %vm335, 1
        %vm348 = vmxor %vm336, 1
        %vm349 = vmand %vm345, %vm347
        %vm350 = vmand %vm346, %vm348
        %v351 = vsel %vm349, 2, %v333
        %v352 = vsel %vm350, 2, %v334
        %vm353 = vmor %vm335, %vm345
        %vm354 = vmor %vm336, %vm346
        %v355 = vsub.f32 %v305, %v307
        %v356 = vsub.f32 %v306, %v308
        %v357 = vmul.f32 %v355, 1.442695
        %v358 = vpow.pop %v357
        %v359 = vmul.f32 %v356, 1.442695
        %v360 = vpow.pop %v359
        %v361 = vadd.f32 %v343, %v358
        %v362 = vadd.f32 %v344, %v360
        %vm363 = vcmp.eq.f32.partialorder %v305, %v307
        %vm364 = vcmp.eq.f32.partialorder %v306, %v308
        %vm365 = vmxor %vm353, 1
        %vm366 = vmxor %vm354, 1
        %vm367 = vmand %vm363, %vm365
        %vm368 = vmand %vm364, %vm366
        %v369 = vsel %vm367, 3, %v351
        %v370 = vsel %vm368, 3, %v352
        %v371 = vrcp.pop %v361
        %v372 = vmul.f32 %v290, %v371
        %v373 = vrcp.pop %v362
        %v374 = vmul.f32 %v291, %v373
        %vm375 = vcmp.ne.s32.totalorder %v369, 0
        %vm376 = vcmp.ne.s32.totalorder %v370, 0
        %vm377 = vcmp.ne.s32.totalorder %v369, 1
        %vm378 = vcmp.ne.s32.totalorder %v370, 1
        %vm379 = vcmp.ne.s32.totalorder %v369, 2
        %vm380 = vcmp.ne.s32.totalorder %v370, 2
        %vm381 = vcmp.ne.s32.totalorder %v369, 3
        %vm382 = vcmp.ne.s32.totalorder %v370, 3
        %vm383 = vcmp.eq.s32.totalorder %v288, 1
        %vm384 = vcmp.eq.s32.totalorder %v289, 1
        %vm385 = vmand %vm375, %vm383
        %vm386 = vmand %vm376, %vm384
        %vm387 = vmand %vm377, %vm383
        %vm388 = vmand %vm378, %vm384
        %vm389 = vmand %vm379, %vm383
        %vm390 = vmand %vm380, %vm384
        %vm391 = vmand %vm381, %vm383
        %vm392 = vmand %vm382, %vm384
        %v393 = vsel %vm385, 1, 0
        %v394 = vsel %vm386, 1, 0
        %v395 = vsel %vm387, 1, 0
        %v396 = vsel %vm388, 1, 0
        %v397 = vsel %vm389, 1, 0
        %v398 = vsel %vm390, 1, 0
        %v399 = vsel %vm391, 1, 0
        %v400 = vsel %vm392, 1, 0
        %v401 = vcvt.s32.f32 %v393
        %v402 = vcvt.s32.f32 %v394
        %v403 = vcvt.s32.f32 %v395
        %v404 = vcvt.s32.f32 %v396
        %v405 = vcvt.s32.f32 %v397
        %v406 = vcvt.s32.f32 %v398
        %v407 = vcvt.s32.f32 %v399
        %v408 = vcvt.s32.f32 %v400
        %v409 = vpack.c.bf16 %v402, %v401
        %v410 = vpack.c.bf16 %v404, %v403
        %v411 = vpack.c.bf16 %v406, %v405
        %v412 = vpack.c.bf16 %v408, %v407
        %v413 = vld [vmem:[#allocation6] sm:$0xf]
        %v414 = vld [vmem:[#allocation6 + $0x4] sm:$0xf]
        %v415 = vld [vmem:[#allocation6 + $0x8] sm:$0xf]
        %v416 = vld [vmem:[#allocation6 + $0xc] sm:$0xf]
        %v417 = vld [vmem:[#allocation6 + $0x10] sm:$0xf]
        %v418 = vld [vmem:[#allocation6 + $0x14] sm:$0xf]
        %v419 = vld [vmem:[#allocation6 + $0x18] sm:$0xf]
        %v420 = vld [vmem:[#allocation6 + $0x1c] sm:$0xf]
        %v421 = vld [vmem:[#allocation6 + $0x20] sm:$0xf]
        %v422 = vld [vmem:[#allocation6 + $0x24] sm:$0xf]
        %v423 = vld [vmem:[#allocation6 + $0x28] sm:$0xf]
        %v424 = vld [vmem:[#allocation6 + $0x2c] sm:$0xf]
        %v425 = vld [vmem:[#allocation6 + $0x30] sm:$0xf]
        %v426 = vld [vmem:[#allocation6 + $0x34] sm:$0xf]
        %v427 = vld [vmem:[#allocation6 + $0x38] sm:$0xf]
        %v428 = vld [vmem:[#allocation6 + $0x3c] sm:$0xf]
        %v445 = vunpack.c.l.b16 %v413
        %v446 = vunpack.c.l.b16 %v414
        %v447 = vunpack.c.l.b16 %v415
        %v448 = vunpack.c.l.b16 %v416
        %v449 = vunpack.c.l.b16 %v417
        %v450 = vunpack.c.l.b16 %v418
        %v451 = vunpack.c.l.b16 %v419
        %v452 = vunpack.c.l.b16 %v420
        %v453 = vunpack.c.l.b16 %v421
        %v454 = vunpack.c.l.b16 %v422
        %v455 = vunpack.c.l.b16 %v423
        %v456 = vunpack.c.l.b16 %v424
        %v457 = vunpack.c.l.b16 %v425
        %v458 = vunpack.c.l.b16 %v426
        %v459 = vunpack.c.l.b16 %v427
        %v460 = vunpack.c.l.b16 %v428
        %v461 = vpack.c.b16 %v446, %v445
        %v462 = vpack.c.b16 %v448, %v447
        %v463 = vpack.c.b16 %v450, %v449
        %v464 = vpack.c.b16 %v452, %v451
        %v465 = vpack.c.b16 %v454, %v453
        %v466 = vpack.c.b16 %v456, %v455
        %v467 = vpack.c.b16 %v458, %v457
        %v468 = vpack.c.b16 %v460, %v459
        %477 = vmatprep.subr.bf16.mxu0 0
        %478 = vmatpush1.bf16.msra.mxu0 %v468
        %479 = vmatprep.subr.bf16.mxu0 0
        %480 = vmatpush1.bf16.msra.mxu0 %v467
        %481 = vmatprep.subr.bf16.mxu0 0
        %482 = vmatpush1.bf16.msra.mxu0 %v466
        %483 = vmatprep.subr.bf16.mxu0 0
        %484 = vmatpush1.bf16.msra.mxu0 %v465
        %485 = vmatprep.subr.bf16.mxu0 0
        %486 = vmatpush1.bf16.msra.mxu0 %v464
        %487 = vmatprep.subr.bf16.mxu0 0
        %488 = vmatpush1.bf16.msra.mxu0 %v463
        %489 = vmatprep.subr.bf16.mxu0 0
        %490 = vmatpush1.bf16.msra.mxu0 %v462
        %491 = vmatprep.subr.bf16.mxu0 0
        %492 = vmatpush1.bf16.msra.mxu0 %v461
        %493 = vmatprep.subr.bf16.mxu0 0
        %494 = vmatpush2.bf16.msra.mxu0 0
        %495 = vmatprep.subr.bf16.mxu0 0
        %496 = vmatpush2.bf16.msra.mxu0 0
        %497 = vmatprep.subr.bf16.mxu0 0
        %498 = vmatpush2.bf16.msra.mxu0 0
        %499 = vmatprep.subr.bf16.mxu0 0
        %500 = vmatpush2.bf16.msra.mxu0 0
        %501 = vmatprep.subr.bf16.mxu0 0
        %502 = vmatpush2.bf16.msra.mxu0 0
        %503 = vmatprep.subr.bf16.mxu0 0
        %504 = vmatpush2.bf16.msra.mxu0 0
        %505 = vmatprep.subr.bf16.mxu0 0
        %506 = vmatpush2.bf16.msra.mxu0 0
        %507 = vmatprep.subr.bf16.mxu0 0
        %508 = vmatpush2.bf16.msra.mxu0 0
        %509 = vmatprep.mubr.bf16.mxu0 0
        %510 = vmatmul.mubr.bf16.gmra.mxu0 %v409
        %v511 = vpop.f32.mrf.mxu0
        %v512 = vadd.f32 0.0, %v511
        %v513 = vpop.f32.mrf.mxu0
        %v514 = vpop.f32.mrf.mxu0
        %v515 = vadd.f32 0.0, %v514
        %v516 = vpop.f32.mrf.mxu0
        %517 = vmatprep.mubr.bf16.mxu0 0
        %518 = vmatmul.mubr.bf16.gmra.mxu0 %v410
        %v519 = vpop.f32.mrf.mxu0
        %v520 = vadd.f32 0.0, %v519
        %v521 = vpop.f32.mrf.mxu0
        %v522 = vpop.f32.mrf.mxu0
        %v523 = vadd.f32 0.0, %v522
        %v524 = vpop.f32.mrf.mxu0
        %525 = vmatprep.mubr.bf16.mxu0 0
        %526 = vmatmul.mubr.bf16.gmra.mxu0 %v411
        %v527 = vpop.f32.mrf.mxu0
        %v528 = vadd.f32 0.0, %v527
        %v529 = vpop.f32.mrf.mxu0
        %v530 = vpop.f32.mrf.mxu0
        %v531 = vadd.f32 0.0, %v530
        %v532 = vpop.f32.mrf.mxu0
        %533 = vmatprep.mubr.bf16.mxu0 0
        %534 = vmatmul.mubr.bf16.gmra.mxu0 %v412
        %v535 = vpop.f32.mrf.mxu0
        %v536 = vadd.f32 0.0, %v535
        %v537 = vpop.f32.mrf.mxu0
        %v538 = vpop.f32.mrf.mxu0
        %v539 = vadd.f32 0.0, %v538
        %v540 = vpop.f32.mrf.mxu0
        %541 = vdwg.mxu0
        %v542 = vpack.c.bf16 %v515, %v512
        %v543 = vpack.c.bf16 %v523, %v520
        %v544 = vpack.c.bf16 %v531, %v528
        %v545 = vpack.c.bf16 %v539, %v536
        %v546 = vld [vmem:[#allocation7] sm:$0xf]
        %v547 = vld [vmem:[#allocation7 + $0x4] sm:$0xf]
        %v550 = vunpack.c.l.b16 %v546
        %v551 = vunpack.c.l.b16 %v547
        %v552 = vpack.c.b16 %v551, %v550
        %vm553 = vcmask 130048
        %v555 = vsel %vm553, %v552, 0
        %557 = vmatprep.subr.bf16.mxu0 0
        %558 = vmatpush1.bf16.msra.mxu0 0
        %559 = vmatprep.subr.bf16.mxu0 0
        %560 = vmatpush1.bf16.msra.mxu0 0
        %561 = vmatprep.subr.bf16.mxu0 0
        %562 = vmatpush1.bf16.msra.mxu0 0
        %563 = vmatprep.subr.bf16.mxu0 0
        %564 = vmatpush1.bf16.msra.mxu0 0
        %565 = vmatprep.subr.bf16.mxu0 0
        %566 = vmatpush1.bf16.msra.mxu0 0
        %567 = vmatprep.subr.bf16.mxu0 0
        %568 = vmatpush1.bf16.msra.mxu0 0
        %569 = vmatprep.subr.bf16.mxu0 0
        %570 = vmatpush1.bf16.msra.mxu0 0
        %571 = vmatprep.subr.bf16.mxu0 0
        %572 = vmatpush1.bf16.msra.mxu0 %v542
        %573 = vmatprep.subr.bf16.mxu0 0
        %574 = vmatpush2.bf16.msra.mxu0 0
        %575 = vmatprep.subr.bf16.mxu0 0
        %576 = vmatpush2.bf16.msra.mxu0 0
        %577 = vmatprep.subr.bf16.mxu0 0
        %578 = vmatpush2.bf16.msra.mxu0 0
        %579 = vmatprep.subr.bf16.mxu0 0
        %580 = vmatpush2.bf16.msra.mxu0 0
        %581 = vmatprep.subr.bf16.mxu0 0
        %582 = vmatpush2.bf16.msra.mxu0 0
        %583 = vmatprep.subr.bf16.mxu0 0
        %584 = vmatpush2.bf16.msra.mxu0 0
        %585 = vmatprep.subr.bf16.mxu0 0
        %586 = vmatpush2.bf16.msra.mxu0 0
        %587 = vmatprep.subr.bf16.mxu0 0
        %588 = vmatpush2.bf16.msra.mxu0 0
        %589 = vmatprep.mubr.bf16.mxu0 0
        %590 = vmatmul.mubr.bf16.gmra.mxu0 %v555
        %v591 = vpop.f32.mrf.mxu0
        %v592 = vadd.f32 0.0, %v591
        %v593 = vpop.f32.mrf.mxu0
        %v594 = vpop.f32.mrf.mxu0
        %v595 = vadd.f32 0.0, %v594
        %v596 = vpop.f32.mrf.mxu0
        %597 = vdwg.mxu0
        %v598 = vunpack.c.l.bf16 %v409
        %v599 = vunpack.c.h.bf16 %v409
        %v600 = vsub.f32 %v592, %v598
        %v601 = vsub.f32 %v595, %v599
        %v602 = vmul.f32 %v600, 0.041666668
        %v603 = vmul.f32 %v601, 0.041666668
        %v604 = vsub.f32 %v602, %v598
        %v605 = vsub.f32 %v603, %v599
        %vm606 = vcmp.lt.f32.partialorder %v604, 0.8333333
        %vm607 = vcmp.lt.f32.partialorder %v605, 0.8333333
        %v608 = vsel %vm606, 0.0, %v604
        %v609 = vsel %vm607, 0.0, %v605
        %v610 = vmul.f32 %v312, %v608
        %v611 = vmul.f32 %v314, %v609
        %v612 = vadd.f32 %v610, 0.0
        %v613 = vadd.f32 %v611, 0.0
        %614 = vmatprep.subr.bf16.mxu0 0
        %615 = vmatpush1.bf16.msra.mxu0 0
        %616 = vmatprep.subr.bf16.mxu0 0
        %617 = vmatpush1.bf16.msra.mxu0 0
        %618 = vmatprep.subr.bf16.mxu0 0
        %619 = vmatpush1.bf16.msra.mxu0 0
        %620 = vmatprep.subr.bf16.mxu0 0
        %621 = vmatpush1.bf16.msra.mxu0 0
        %622 = vmatprep.subr.bf16.mxu0 0
        %623 = vmatpush1.bf16.msra.mxu0 0
        %624 = vmatprep.subr.bf16.mxu0 0
        %625 = vmatpush1.bf16.msra.mxu0 0
        %626 = vmatprep.subr.bf16.mxu0 0
        %627 = vmatpush1.bf16.msra.mxu0 0
        %628 = vmatprep.subr.bf16.mxu0 0
        %629 = vmatpush1.bf16.msra.mxu0 %v543
        %630 = vmatprep.subr.bf16.mxu0 0
        %631 = vmatpush2.bf16.msra.mxu0 0
        %632 = vmatprep.subr.bf16.mxu0 0
        %633 = vmatpush2.bf16.msra.mxu0 0
        %634 = vmatprep.subr.bf16.mxu0 0
        %635 = vmatpush2.bf16.msra.mxu0 0
        %636 = vmatprep.subr.bf16.mxu0 0
        %637 = vmatpush2.bf16.msra.mxu0 0
        %638 = vmatprep.subr.bf16.mxu0 0
        %639 = vmatpush2.bf16.msra.mxu0 0
        %640 = vmatprep.subr.bf16.mxu0 0
        %641 = vmatpush2.bf16.msra.mxu0 0
        %642 = vmatprep.subr.bf16.mxu0 0
        %643 = vmatpush2.bf16.msra.mxu0 0
        %644 = vmatprep.subr.bf16.mxu0 0
        %645 = vmatpush2.bf16.msra.mxu0 0
        %646 = vmatprep.mubr.bf16.mxu0 0
        %647 = vmatmul.mubr.bf16.gmra.mxu0 %v555
        %v648 = vpop.f32.mrf.mxu0
        %v649 = vadd.f32 0.0, %v648
        %v650 = vpop.f32.mrf.mxu0
        %v651 = vpop.f32.mrf.mxu0
        %v652 = vadd.f32 0.0, %v651
        %v653 = vpop.f32.mrf.mxu0
        %654 = vdwg.mxu0
        %v655 = vunpack.c.l.bf16 %v410
        %v656 = vunpack.c.h.bf16 %v410
        %v657 = vsub.f32 %v649, %v655
        %v658 = vsub.f32 %v652, %v656
        %v659 = vmul.f32 %v657, 0.041666668
        %v660 = vmul.f32 %v658, 0.041666668
        %v661 = vsub.f32 %v659, %v655
        %v662 = vsub.f32 %v660, %v656
        %vm663 = vcmp.lt.f32.partialorder %v661, 0.8333333
        %vm664 = vcmp.lt.f32.partialorder %v662, 0.8333333
        %v665 = vsel %vm663, 0.0, %v661
        %v666 = vsel %vm664, 0.0, %v662
        %v667 = vmul.f32 %v322, %v665
        %v668 = vmul.f32 %v324, %v666
        %v669 = vadd.f32 %v612, %v667
        %v670 = vadd.f32 %v613, %v668
        %671 = vmatprep.subr.bf16.mxu0 0
        %672 = vmatpush1.bf16.msra.mxu0 0
        %673 = vmatprep.subr.bf16.mxu0 0
        %674 = vmatpush1.bf16.msra.mxu0 0
        %675 = vmatprep.subr.bf16.mxu0 0
        %676 = vmatpush1.bf16.msra.mxu0 0
        %677 = vmatprep.subr.bf16.mxu0 0
        %678 = vmatpush1.bf16.msra.mxu0 0
        %679 = vmatprep.subr.bf16.mxu0 0
        %680 = vmatpush1.bf16.msra.mxu0 0
        %681 = vmatprep.subr.bf16.mxu0 0
        %682 = vmatpush1.bf16.msra.mxu0 0
        %683 = vmatprep.subr.bf16.mxu0 0
        %684 = vmatpush1.bf16.msra.mxu0 0
        %685 = vmatprep.subr.bf16.mxu0 0
        %686 = vmatpush1.bf16.msra.mxu0 %v544
        %687 = vmatprep.subr.bf16.mxu0 0
        %688 = vmatpush2.bf16.msra.mxu0 0
        %689 = vmatprep.subr.bf16.mxu0 0
        %690 = vmatpush2.bf16.msra.mxu0 0
        %691 = vmatprep.subr.bf16.mxu0 0
        %692 = vmatpush2.bf16.msra.mxu0 0
        %693 = vmatprep.subr.bf16.mxu0 0
        %694 = vmatpush2.bf16.msra.mxu0 0
        %695 = vmatprep.subr.bf16.mxu0 0
        %696 = vmatpush2.bf16.msra.mxu0 0
        %697 = vmatprep.subr.bf16.mxu0 0
        %698 = vmatpush2.bf16.msra.mxu0 0
        %699 = vmatprep.subr.bf16.mxu0 0
        %700 = vmatpush2.bf16.msra.mxu0 0
        %701 = vmatprep.subr.bf16.mxu0 0
        %702 = vmatpush2.bf16.msra.mxu0 0
        %703 = vmatprep.mubr.bf16.mxu0 0
        %704 = vmatmul.mubr.bf16.gmra.mxu0 %v555
        %v705 = vpop.f32.mrf.mxu0
        %v706 = vadd.f32 0.0, %v705
        %v707 = vpop.f32.mrf.mxu0
        %v708 = vpop.f32.mrf.mxu0
        %v709 = vadd.f32 0.0, %v708
        %v710 = vpop.f32.mrf.mxu0
        %711 = vdwg.mxu0
        %v712 = vunpack.c.l.bf16 %v411
        %v713 = vunpack.c.h.bf16 %v411
        %v714 = vsub.f32 %v706, %v712
        %v715 = vsub.f32 %v709, %v713
        %v716 = vmul.f32 %v714, 0.041666668
        %v717 = vmul.f32 %v715, 0.041666668
        %v718 = vsub.f32 %v716, %v712
        %v719 = vsub.f32 %v717, %v713
        %vm720 = vcmp.lt.f32.partialorder %v718, 0.8333333
        %vm721 = vcmp.lt.f32.partialorder %v719, 0.8333333
        %v722 = vsel %vm720, 0.0, %v718
        %v723 = vsel %vm721, 0.0, %v719
        %v724 = vmul.f32 %v340, %v722
        %v725 = vmul.f32 %v342, %v723
        %v726 = vadd.f32 %v669, %v724
        %v727 = vadd.f32 %v670, %v725
        %728 = vmatprep.subr.bf16.mxu0 0
        %729 = vmatpush1.bf16.msra.mxu0 0
        %730 = vmatprep.subr.bf16.mxu0 0
        %731 = vmatpush1.bf16.msra.mxu0 0
        %732 = vmatprep.subr.bf16.mxu0 0
        %733 = vmatpush1.bf16.msra.mxu0 0
        %734 = vmatprep.subr.bf16.mxu0 0
        %735 = vmatpush1.bf16.msra.mxu0 0
        %736 = vmatprep.subr.bf16.mxu0 0
        %737 = vmatpush1.bf16.msra.mxu0 0
        %738 = vmatprep.subr.bf16.mxu0 0
        %739 = vmatpush1.bf16.msra.mxu0 0
        %740 = vmatprep.subr.bf16.mxu0 0
        %741 = vmatpush1.bf16.msra.mxu0 0
        %742 = vmatprep.subr.bf16.mxu0 0
        %743 = vmatpush1.bf16.msra.mxu0 %v545
        %744 = vmatprep.subr.bf16.mxu0 0
        %745 = vmatpush2.bf16.msra.mxu0 0
        %746 = vmatprep.subr.bf16.mxu0 0
        %747 = vmatpush2.bf16.msra.mxu0 0
        %748 = vmatprep.subr.bf16.mxu0 0
        %749 = vmatpush2.bf16.msra.mxu0 0
        %750 = vmatprep.subr.bf16.mxu0 0
        %751 = vmatpush2.bf16.msra.mxu0 0
        %752 = vmatprep.subr.bf16.mxu0 0
        %753 = vmatpush2.bf16.msra.mxu0 0
        %754 = vmatprep.subr.bf16.mxu0 0
        %755 = vmatpush2.bf16.msra.mxu0 0
        %756 = vmatprep.subr.bf16.mxu0 0
        %757 = vmatpush2.bf16.msra.mxu0 0
        %758 = vmatprep.subr.bf16.mxu0 0
        %759 = vmatpush2.bf16.msra.mxu0 0
        %760 = vmatprep.mubr.bf16.mxu0 0
        %761 = vmatmul.mubr.bf16.gmra.mxu0 %v555
        %v762 = vpop.f32.mrf.mxu0
        %v763 = vadd.f32 0.0, %v762
        %v764 = vpop.f32.mrf.mxu0
        %v765 = vpop.f32.mrf.mxu0
        %v766 = vadd.f32 0.0, %v765
        %v767 = vpop.f32.mrf.mxu0
        %768 = vdwg.mxu0
        %v769 = vunpack.c.l.bf16 %v412
        %v770 = vunpack.c.h.bf16 %v412
        %v771 = vsub.f32 %v763, %v769
        %v772 = vsub.f32 %v766, %v770
        %v773 = vmul.f32 %v771, 0.041666668
        %v774 = vmul.f32 %v772, 0.041666668
        %v775 = vsub.f32 %v773, %v769
        %v776 = vsub.f32 %v774, %v770
        %vm777 = vcmp.lt.f32.partialorder %v775, 0.8333333
        %vm778 = vcmp.lt.f32.partialorder %v776, 0.8333333
        %v779 = vsel %vm777, 0.0, %v775
        %v780 = vsel %vm778, 0.0, %v776
        %v781 = vmul.f32 %v358, %v779
        %v782 = vmul.f32 %v360, %v780
        %v783 = vadd.f32 %v726, %v781
        %v784 = vadd.f32 %v727, %v782
        %v785 = vmul.f32 %v783, %v372
        %v786 = vmul.f32 %v784, %v374
        %v787 = vadd.f32 %v785, %v786
        %788 = vadd.xlane.f32.xlu0 %v787
        %v789 = vpop.xlane.xlu0 %788
        %v790 = vrot.slane %v789, 4
        %v791 = vadd.f32 %v789, %v790
        %v792 = vrot.slane %v791, 2
        %v793 = vadd.f32 %v791, %v792
        %v794 = vrot.slane %v793, 1
        %v795 = vadd.f32 %v793, %v794
        %s796 = vtos %v795
        %v797 = vstv %s796
        %vm798 = vcmask 0
        %799 = vst.msk [vmem:[%s282] sm:$0x1] %vm798, %v797
        %p800 = scmp.lt.s32.totalorder %s22, 1
        %s801 = scalar_select %p800, %s22, 1
        %s802 = scalar_lea.vmem %s4, %s801
        // Predicated region
        $region53: #{tpu_custom_call.1} parent=35 // pred_check
          %p803 = pneg %p134
        $region54: #{tpu_custom_call.1} parent=35 // pred_check_branch
          %805 = sbr.rel (%p803) target = $region56
        $region55: #{tpu_custom_call.1} parent=35 // pred_region
          _
        $region56: #{tpu_custom_call.1} parent=35 // pred_fallthru
          _
      $region36: #{tpu_custom_call.1} parent=5 // pred_fallthru
        _
      %p806 = scmp.le.s32.totalorder 2, %s17
      // Predicated region
      $region57: #{tpu_custom_call.1} parent=5 // pred_check
        %p807 = pneg %p806
      $region58: #{tpu_custom_call.1} parent=5 // pred_check_branch
        %809 = sbr.rel (%p807) target = $region60
      $region59: #{tpu_custom_call.1} parent=5 // pred_region
        %s810 = ssub.s32 %s17, 2
        // Predicated region
        $region61: #{tpu_custom_call.1} parent=59 // pred_check
          %p811 = pneg %p140
        $region62: #{tpu_custom_call.1} parent=59 // pred_check_branch
          %813 = sbr.rel (%p811) target = $region64
        $region63: #{tpu_custom_call.1} parent=59 // pred_region
          %p814 = scmp.lt.s32.totalorder %s23, 1
          %s815 = scalar_select %p814, %s23, 1
          %s816 = scalar_lea.vmem %s4, %s815
        $region64: #{tpu_custom_call.1} parent=59 // pred_fallthru
          _
      $region60: #{tpu_custom_call.1} parent=5 // pred_fallthru
        _
    $region6: #{tpu_custom_call.1} parent=1 // loop_footer
      %s21 = sadd.s32 1, %s17
    $region7: #{tpu_custom_call.1} parent=1 // loop_footer_branch
      %16 = sbr.rel target = $region3
    $region8: #{tpu_custom_call.1} parent=1 // loop_exit
      _
    %817 = vsyncpa [#allocation3], 1
    %s818 = scalar_lea.sflag [#allocation3], 1
    %819 = vsyncpa %s818, 1
    %820 = vsyncpa [#allocation5], 1
    %s821 = scalar_lea.sflag [#allocation5], 1
    %822 = vsyncpa %s821, 1
    %823 = vsyncpa [#allocation8], 1

</llo_original>
